<compile_context>
chip_gen: v6e
topology: v6e:2x2x1
jax: 0.10.0
libtpu: 0.0.40
codegen_flags: <defaults>
</compile_context>

<pallas_src>
import functools

import jax
import jax.numpy as jnp
from jax.experimental import pallas as pl
from jax.experimental.pallas import tpu as pltpu

IGNORE_INDEX = -100
ALPHA = 0.5
BETA = 0.5
EPS = 1e-7
FOCAL_POW = 0.75

_LANES = 128
_VMEM_LIMIT_BYTES = 32 * 1024 * 1024       # scoped VMEM requested from the compiler
_TARGET_BLOCK_BYTES = 3 * 512 * 1024       # ~1.5 MiB preds block per grid step


def _pick_row_tile(num_classes, rows_total, itemsize):
    """Sublane-row tile: ~1.5 MiB preds blocks, 8-aligned, >=4 j-steps when possible."""
    per_row = num_classes * _LANES * itemsize + _LANES * 4   # preds row + target row
    rows = max(8, (_TARGET_BLOCK_BYTES // per_row) // 8 * 8)
    quarter = ((pl.cdiv(rows_total, 4) + 7) // 8) * 8        # v7x megacore: aim J >= 4
    if quarter >= 64:
        rows = min(rows, quarter)
    if rows >= rows_total:
        return rows_total            # full-dim block (allowed even if not 8-aligned)
    return rows


def _focal_tversky_partial_kernel(preds_ref, tgt_ref, out_ref, *,
                                  num_classes, row_tile, rows_total):
    """One (batch n, row-tile j) step: softmax over classes + per-class partial sums."""
    ragged_rows = (rows_total % row_tile) != 0

    x = preds_ref[...].astype(jnp.float32)             # (C, S, 128) pixel-slab layout
    tgt = tgt_ref[...]                                  # (S, 128) int32

    if ragged_rows:
        # Only compiled when the last j block sticks out past the real row count:
        # clamp garbage rows to ignore_index so they never match a class id.
        j = pl.program_id(1)
        row = jax.lax.broadcasted_iota(jnp.int32, tgt.shape, 0) + j * row_tile
        tgt = jnp.where(row < rows_total, tgt, IGNORE_INDEX)

    valid = tgt != IGNORE_INDEX                         # (S, 128)

    # Softmax over the class axis == elementwise max/add across the C slabs (pure VPU).
    m = jnp.max(x, axis=0)                              # (S, 128)
    e = jnp.exp(x - m[None])                            # (C, S, 128)
    inv = pl.reciprocal(jnp.sum(e, axis=0), approx=False)   # (S, 128)

    if ragged_rows:
        # Garbage rows may hold inf/NaN logits; the select keeps NaN out of the sums.
        probs = jnp.where(valid[None], e * inv[None], 0.0)
    else:
        # Fold the valid mask into the normalizer: masked probs in a single multiply.
        probs = e * (inv * valid.astype(jnp.float32))[None]

    pt_rows, ps_rows, ts_rows = [], [], []
    for c in range(num_classes):
        p_c = probs[c]                                  # (S, 128)
        hot = tgt == c                                  # ignored/padded never match
        pt_rows.append(jnp.sum(jnp.where(hot, p_c, 0.0), axis=0, keepdims=True))
        ps_rows.append(jnp.sum(p_c, axis=0, keepdims=True))
        ts_rows.append(jnp.sum(jnp.where(hot, 1.0, 0.0), axis=0, keepdims=True))

    # Single fused, lane-dense store: (3*C, 128) partials for this (n, j) block.
    out_ref[...] = jnp.concatenate(pt_rows + ps_rows + ts_rows, axis=0)


@functools.partial(jax.jit, static_argnames=("row_tile",))
def focal_tversky(preds, target, row_tile=None):
    """preds: (N, C, H, W) float logits (f32 or bf16); target: (N, H, W) int labels."""
    N, C, H, W = preds.shape
    HW = H * W

    # Free contiguous reshapes; pad the pixel axis to a multiple of 128 only when
    # needed (padded targets = ignore_index so they drop out of every sum).
    p = preds.reshape(N, C, HW)
    t = target.reshape(N, HW).astype(jnp.int32)
    pad = (-HW) % _LANES
    if pad:
        p = jnp.pad(p, ((0, 0), (0, 0), (0, pad)))
        t = jnp.pad(t, ((0, 0), (0, pad)), constant_values=IGNORE_INDEX)
    rows_total = (HW + pad) // _LANES
    p = p.reshape(N, C, rows_total, _LANES)
    t = t.reshape(N, rows_total, _LANES)

    if row_tile is None:
        row_tile = _pick_row_tile(C, rows_total, jnp.dtype(preds.dtype).itemsize)
    J = pl.cdiv(rows_total, row_tile)

    kernel = functools.partial(_focal_tversky_partial_kernel, num_classes=C,
                               row_tile=row_tile, rows_total=rows_total)

    parts = pl.pallas_call(
        kernel,
        out_shape=jax.ShapeDtypeStruct((N, J, 3 * C, _LANES), jnp.float32),
        grid_spec=pltpu.PrefetchScalarGridSpec(
            num_scalar_prefetch=0,
            grid=(N, J),
            in_specs=[
                pl.BlockSpec((None, C, row_tile, _LANES), lambda n, j: (n, 0, j, 0)),
                pl.BlockSpec((None, row_tile, _LANES), lambda n, j: (n, j, 0)),
            ],
            out_specs=pl.BlockSpec((None, None, 3 * C, _LANES),
                                   lambda n, j: (n, j, 0, 0)),
        ),
        compiler_params=pltpu.CompilerParams(
            dimension_semantics=("parallel", "parallel"),
            vmem_limit_bytes=_VMEM_LIMIT_BYTES,
        ),
    )(p, t)

    # Tiny finalize: combine partials, Tversky score per class, focal power.
    sums = jnp.sum(parts, axis=(0, 1, 3)).reshape(3, C)
    pt, psum, tsum = sums[0], sums[1], sums[2]
    fp = psum - pt
    fn = tsum - pt
    score = pt / jnp.maximum(pt + ALPHA * fp + BETA * fn, EPS)
    loss_c = jnp.where(tsum > 0, 1.0 - score, 0.0)
    tversky = jnp.mean(loss_c)
    return (1.0 + tversky) ** FOCAL_POW


def _reference(preds, target):
    # Pure-JAX replica of smp TverskyLoss(multiclass) + focal power, for checking.
    N, C, H, W = preds.shape
    probs = jax.nn.softmax(preds.astype(jnp.float32), axis=1).reshape(N, C, -1)
    t = target.reshape(N, -1)
    valid = (t != IGNORE_INDEX)
    probs = probs * valid[:, None, :]
    onehot = jax.nn.one_hot(jnp.where(valid, t, 0), C, axis=-1)      # N, HW, C
    onehot = jnp.transpose(onehot, (0, 2, 1)) * valid[:, None, :]    # N, C, HW
    dims = (0, 2)
    inter = jnp.sum(probs * onehot, axis=dims)
    fp = jnp.sum(probs * (1.0 - onehot), axis=dims)
    fn = jnp.sum((1.0 - probs) * onehot, axis=dims)
    score = inter / jnp.maximum(inter + ALPHA * fp + BETA * fn, EPS)
    loss = (1.0 - score) * (jnp.sum(onehot, axis=dims) > 0)
    return (1.0 + jnp.mean(loss)) ** FOCAL_POW


def _run_case(key, N, C, H, W, dtype=jnp.float32, row_tile=None, tol=1e-5):
    k1, k2, k3 = jax.random.split(key, 3)
    preds = jax.random.normal(k1, (N, C, H, W), dtype=dtype)
    target = jax.random.randint(k2, (N, H, W), 0, C, dtype=jnp.int32)
    ignore_mask = jax.random.uniform(k3, (N, H, W)) < 0.1
    target = jnp.where(ignore_mask, IGNORE_INDEX, target)

    out = focal_tversky(preds, target, row_tile=row_tile)
    jax.block_until_ready(out)
    ref = _reference(preds, target)
    assert jnp.allclose(out, ref, atol=tol, rtol=tol), (out, ref)


if __name__ == "__main__":
    key = jax.random.PRNGKey(0)
    ka, kb, kc, kd = jax.random.split(key, 4)

    # Base case (H*W multiple of 128): no padding, single pixel-tile per batch.
    _run_case(ka, N=2, C=4, H=16, W=16)
    # Ragged pixel count (H*W = 144): exercises the ignore-padded tail path.
    _run_case(kb, N=2, C=4, H=12, W=12)
    # bf16 logits path (in-kernel upcast, 16-row sublane packing of the input block).
    _run_case(kc, N=2, C=4, H=16, W=16, dtype=jnp.bfloat16)
    # Forced small row tile (8) on 18 rows: exercises the ragged-row in-kernel mask.
    _run_case(kd, N=2, C=4, H=48, W=48, row_tile=8)

    print("KERNEL_OK")
</pallas_src>

<mosaic_0001>
module attributes {stable_mosaic.version = 11 : i64} {
  func.func @_focal_tversky_partial_kernel(%arg0: i32, %arg1: i32, %arg2: memref<1x4x2x128xf32, #tpu.memory_space<vmem>>, %arg3: memref<1x2x128xi32, #tpu.memory_space<vmem>>, %arg4: memref<1x1x12x128xf32, #tpu.memory_space<vmem>>) attributes {dimension_semantics = [#tpu.dimension_semantics<parallel>, #tpu.dimension_semantics<parallel>], iteration_bounds = array<i64: 2, 1>, scalar_prefetch = 0 : i64, scratch_operands = 0 : i64, tpu.core_type = #tpu.core_type<tc>, window_params = [{transform_indices = @transform_0, window_bounds = array<i64: 1, 4, 2, 128>}, {transform_indices = @transform_1, window_bounds = array<i64: 1, 2, 128>}, {transform_indices = @transform_2, window_bounds = array<i64: 1, 1, 12, 128>}]} {
    %c0 = arith.constant 0 : index
    %c0_0 = arith.constant 0 : index
    %c0_1 = arith.constant 0 : index
    %c0_2 = arith.constant 0 : index
    %0 = vector.load %arg2[%c0, %c0_0, %c0_1, %c0_2] : memref<1x4x2x128xf32, #tpu.memory_space<vmem>>, vector<1x4x2x128xf32>
    %1 = vector.shape_cast %0 : vector<1x4x2x128xf32> to vector<4x2x128xf32>
    %c0_3 = arith.constant 0 : index
    %c0_4 = arith.constant 0 : index
    %c0_5 = arith.constant 0 : index
    %2 = vector.load %arg3[%c0_3, %c0_4, %c0_5] : memref<1x2x128xi32, #tpu.memory_space<vmem>>, vector<1x2x128xi32>
    %3 = vector.shape_cast %2 : vector<1x2x128xi32> to vector<2x128xi32>
    %c-100_i32 = arith.constant -100 : i32
    %4 = vector.broadcast %c-100_i32 : i32 to vector<2x128xi32>
    %5 = arith.cmpi ne, %3, %4 : vector<2x128xi32>
    %cst = arith.constant dense<0xFF800000> : vector<2x128xf32>
    %6 = vector.multi_reduction <maximumf>, %1, %cst [0] : vector<4x2x128xf32> to vector<2x128xf32>
    %7 = vector.shape_cast %6 : vector<2x128xf32> to vector<1x2x128xf32>
    %8 = vector.broadcast %7 : vector<1x2x128xf32> to vector<4x2x128xf32>
    %9 = arith.subf %1, %8 : vector<4x2x128xf32>
    %10 = math.exp %9 : vector<4x2x128xf32>
    %cst_6 = arith.constant dense<0.000000e+00> : vector<2x128xf32>
    %11 = vector.multi_reduction <add>, %10, %cst_6 [0] : vector<4x2x128xf32> to vector<2x128xf32>
    %12 = tpu.reciprocal %11 : vector<2x128xf32> -> vector<2x128xf32>
    %13 = arith.extui %5 : vector<2x128xi1> to vector<2x128xi32>
    %14 = arith.sitofp %13 : vector<2x128xi32> to vector<2x128xf32>
    %15 = arith.mulf %12, %14 : vector<2x128xf32>
    %16 = vector.shape_cast %15 : vector<2x128xf32> to vector<1x2x128xf32>
    %17 = vector.broadcast %16 : vector<1x2x128xf32> to vector<4x2x128xf32>
    %18 = arith.mulf %10, %17 : vector<4x2x128xf32>
    %19 = vector.extract_strided_slice %18 {offsets = [0, 0, 0], sizes = [1, 2, 128], strides = [1, 1, 1]} : vector<4x2x128xf32> to vector<1x2x128xf32>
    %20 = vector.shape_cast %19 : vector<1x2x128xf32> to vector<2x128xf32>
    %c0_i32 = arith.constant 0 : i32
    %21 = vector.broadcast %c0_i32 : i32 to vector<2x128xi32>
    %22 = arith.cmpi eq, %3, %21 : vector<2x128xi32>
    %cst_7 = arith.constant 0.000000e+00 : f32
    %23 = vector.broadcast %cst_7 : f32 to vector<2x128xf32>
    %24 = arith.select %22, %20, %23 : vector<2x128xi1>, vector<2x128xf32>
    %cst_8 = arith.constant dense<0.000000e+00> : vector<128xf32>
    %25 = vector.multi_reduction <add>, %24, %cst_8 [0] : vector<2x128xf32> to vector<128xf32>
    %26 = vector.shape_cast %25 : vector<128xf32> to vector<1x128xf32>
    %cst_9 = arith.constant dense<0.000000e+00> : vector<128xf32>
    %27 = vector.multi_reduction <add>, %20, %cst_9 [0] : vector<2x128xf32> to vector<128xf32>
    %28 = vector.shape_cast %27 : vector<128xf32> to vector<1x128xf32>
    %cst_10 = arith.constant 1.000000e+00 : f32
    %cst_11 = arith.constant 0.000000e+00 : f32
    %29 = vector.broadcast %cst_10 : f32 to vector<2x128xf32>
    %30 = vector.broadcast %cst_11 : f32 to vector<2x128xf32>
    %31 = arith.select %22, %29, %30 : vector<2x128xi1>, vector<2x128xf32>
    %cst_12 = arith.constant dense<0.000000e+00> : vector<128xf32>
    %32 = vector.multi_reduction <add>, %31, %cst_12 [0] : vector<2x128xf32> to vector<128xf32>
    %33 = vector.shape_cast %32 : vector<128xf32> to vector<1x128xf32>
    %34 = vector.extract_strided_slice %18 {offsets = [1, 0, 0], sizes = [1, 2, 128], strides = [1, 1, 1]} : vector<4x2x128xf32> to vector<1x2x128xf32>
    %35 = vector.shape_cast %34 : vector<1x2x128xf32> to vector<2x128xf32>
    %c1_i32 = arith.constant 1 : i32
    %36 = vector.broadcast %c1_i32 : i32 to vector<2x128xi32>
    %37 = arith.cmpi eq, %3, %36 : vector<2x128xi32>
    %cst_13 = arith.constant 0.000000e+00 : f32
    %38 = vector.broadcast %cst_13 : f32 to vector<2x128xf32>
    %39 = arith.select %37, %35, %38 : vector<2x128xi1>, vector<2x128xf32>
    %cst_14 = arith.constant dense<0.000000e+00> : vector<128xf32>
    %40 = vector.multi_reduction <add>, %39, %cst_14 [0] : vector<2x128xf32> to vector<128xf32>
    %41 = vector.shape_cast %40 : vector<128xf32> to vector<1x128xf32>
    %cst_15 = arith.constant dense<0.000000e+00> : vector<128xf32>
    %42 = vector.multi_reduction <add>, %35, %cst_15 [0] : vector<2x128xf32> to vector<128xf32>
    %43 = vector.shape_cast %42 : vector<128xf32> to vector<1x128xf32>
    %cst_16 = arith.constant 1.000000e+00 : f32
    %cst_17 = arith.constant 0.000000e+00 : f32
    %44 = vector.broadcast %cst_16 : f32 to vector<2x128xf32>
    %45 = vector.broadcast %cst_17 : f32 to vector<2x128xf32>
    %46 = arith.select %37, %44, %45 : vector<2x128xi1>, vector<2x128xf32>
    %cst_18 = arith.constant dense<0.000000e+00> : vector<128xf32>
    %47 = vector.multi_reduction <add>, %46, %cst_18 [0] : vector<2x128xf32> to vector<128xf32>
    %48 = vector.shape_cast %47 : vector<128xf32> to vector<1x128xf32>
    %49 = vector.extract_strided_slice %18 {offsets = [2, 0, 0], sizes = [1, 2, 128], strides = [1, 1, 1]} : vector<4x2x128xf32> to vector<1x2x128xf32>
    %50 = vector.shape_cast %49 : vector<1x2x128xf32> to vector<2x128xf32>
    %c2_i32 = arith.constant 2 : i32
    %51 = vector.broadcast %c2_i32 : i32 to vector<2x128xi32>
    %52 = arith.cmpi eq, %3, %51 : vector<2x128xi32>
    %cst_19 = arith.constant 0.000000e+00 : f32
    %53 = vector.broadcast %cst_19 : f32 to vector<2x128xf32>
    %54 = arith.select %52, %50, %53 : vector<2x128xi1>, vector<2x128xf32>
    %cst_20 = arith.constant dense<0.000000e+00> : vector<128xf32>
    %55 = vector.multi_reduction <add>, %54, %cst_20 [0] : vector<2x128xf32> to vector<128xf32>
    %56 = vector.shape_cast %55 : vector<128xf32> to vector<1x128xf32>
    %cst_21 = arith.constant dense<0.000000e+00> : vector<128xf32>
    %57 = vector.multi_reduction <add>, %50, %cst_21 [0] : vector<2x128xf32> to vector<128xf32>
    %58 = vector.shape_cast %57 : vector<128xf32> to vector<1x128xf32>
    %cst_22 = arith.constant 1.000000e+00 : f32
    %cst_23 = arith.constant 0.000000e+00 : f32
    %59 = vector.broadcast %cst_22 : f32 to vector<2x128xf32>
    %60 = vector.broadcast %cst_23 : f32 to vector<2x128xf32>
    %61 = arith.select %52, %59, %60 : vector<2x128xi1>, vector<2x128xf32>
    %cst_24 = arith.constant dense<0.000000e+00> : vector<128xf32>
    %62 = vector.multi_reduction <add>, %61, %cst_24 [0] : vector<2x128xf32> to vector<128xf32>
    %63 = vector.shape_cast %62 : vector<128xf32> to vector<1x128xf32>
    %64 = vector.extract_strided_slice %18 {offsets = [3, 0, 0], sizes = [1, 2, 128], strides = [1, 1, 1]} : vector<4x2x128xf32> to vector<1x2x128xf32>
    %65 = vector.shape_cast %64 : vector<1x2x128xf32> to vector<2x128xf32>
    %c3_i32 = arith.constant 3 : i32
    %66 = vector.broadcast %c3_i32 : i32 to vector<2x128xi32>
    %67 = arith.cmpi eq, %3, %66 : vector<2x128xi32>
    %cst_25 = arith.constant 0.000000e+00 : f32
    %68 = vector.broadcast %cst_25 : f32 to vector<2x128xf32>
    %69 = arith.select %67, %65, %68 : vector<2x128xi1>, vector<2x128xf32>
    %cst_26 = arith.constant dense<0.000000e+00> : vector<128xf32>
    %70 = vector.multi_reduction <add>, %69, %cst_26 [0] : vector<2x128xf32> to vector<128xf32>
    %71 = vector.shape_cast %70 : vector<128xf32> to vector<1x128xf32>
    %cst_27 = arith.constant dense<0.000000e+00> : vector<128xf32>
    %72 = vector.multi_reduction <add>, %65, %cst_27 [0] : vector<2x128xf32> to vector<128xf32>
    %73 = vector.shape_cast %72 : vector<128xf32> to vector<1x128xf32>
    %cst_28 = arith.constant 1.000000e+00 : f32
    %cst_29 = arith.constant 0.000000e+00 : f32
    %74 = vector.broadcast %cst_28 : f32 to vector<2x128xf32>
    %75 = vector.broadcast %cst_29 : f32 to vector<2x128xf32>
    %76 = arith.select %67, %74, %75 : vector<2x128xi1>, vector<2x128xf32>
    %cst_30 = arith.constant dense<0.000000e+00> : vector<128xf32>
    %77 = vector.multi_reduction <add>, %76, %cst_30 [0] : vector<2x128xf32> to vector<128xf32>
    %78 = vector.shape_cast %77 : vector<128xf32> to vector<1x128xf32>
    %79 = tpu.concatenate %26, %41, %56, %71, %28, %43, %58, %73, %33, %48, %63, %78 in 0 : vector<1x128xf32>, vector<1x128xf32>, vector<1x128xf32>, vector<1x128xf32>, vector<1x128xf32>, vector<1x128xf32>, vector<1x128xf32>, vector<1x128xf32>, vector<1x128xf32>, vector<1x128xf32>, vector<1x128xf32>, vector<1x128xf32> -> vector<12x128xf32>
    %c0_31 = arith.constant 0 : index
    %c0_32 = arith.constant 0 : index
    %c0_33 = arith.constant 0 : index
    %c0_34 = arith.constant 0 : index
    %80 = vector.load %arg4[%c0_31, %c0_32, %c0_33, %c0_34] : memref<1x1x12x128xf32, #tpu.memory_space<vmem>>, vector<1x1x12x128xf32>
    %81 = vector.shape_cast %80 : vector<1x1x12x128xf32> to vector<12x128xf32>
    %82 = vector.shape_cast %79 : vector<12x128xf32> to vector<1x1x12x128xf32>
    tpu.vector_store %arg4[%c0_31, %c0_32, %c0_33, %c0_34], %82 {strides = array<i32>} : memref<1x1x12x128xf32, #tpu.memory_space<vmem>>, vector<1x1x12x128xf32>,
    return
  }
  func.func @transform_0(%arg0: i32, %arg1: i32) -> (i32, i32, i32, i32) {
    %c0_i32 = arith.constant 0 : i32
    %c0_i32_0 = arith.constant 0 : i32
    %c0_i32_1 = arith.constant 0 : i32
    return %arg0, %c0_i32, %arg1, %c0_i32_0 : i32, i32, i32, i32
  }
  func.func @transform_1(%arg0: i32, %arg1: i32) -> (i32, i32, i32) {
    %c0_i32 = arith.constant 0 : i32
    %c0_i32_0 = arith.constant 0 : i32
    return %arg0, %arg1, %c0_i32 : i32, i32, i32
  }
  func.func @transform_2(%arg0: i32, %arg1: i32) -> (i32, i32, i32, i32) {
    %c0_i32 = arith.constant 0 : i32
    %c0_i32_0 = arith.constant 0 : i32
    %c0_i32_1 = arith.constant 0 : i32
    return %arg0, %arg1, %c0_i32, %c0_i32_0 : i32, i32, i32, i32
  }
}

</mosaic_0001>

<llo_original>
// kernel: focal_tversky.1
$region0: #{focal_tversky.1}
  #allocation0 [shape = 'u32[]', space=smem, size = 0x4, offset = 0x4, fixed_abs, tag = 'smem constant byte address 0x4 - core index']
  #allocation1 [shape = 'u32[144,128]{1,0:T(1,128)}', space=vmem, size = 0x12000, scoped, tag = 'internal scratch']
  %s0 = inlined_call_operand.vmem [shape: f32[2,4,2,128], index: 0, kind: input, shape index: {}]
  %s1 = inlined_call_operand.vmem [shape: s32[2,2,128], index: 1, kind: input, shape index: {}]
  %s2 = inlined_call_operand.vmem [shape: f32[2,1,12,128], index: 2, kind: output, shape index: {}]
  %s3 = sld [smem:[#allocation0]]
  $region41: #{focal_tversky.1} parent=0
    _
  %s5 = ssub.s32 1, %s3
  %s6 = scalar_select 0, %s5, %s3
  loop: start=0, step=1, limit=4
  $region2: #{focal_tversky.1} parent=0 // loop_pre_header
    _
  $region3: #{focal_tversky.1} parent=0 // loop_header
    %s8 = sphi 0, %s12
    %p9 = scmp.ge.s32.totalorder %s8, 4
    %s15 = sphi 0, %s27
    %s16 = sphi 0, %s23
    %s17 = sphi 0, %s15
    %s18 = sphi 0, %s16
    %s19 = sphi 0, %s17
    %s20 = sphi 0, %s18
    %s32 = sphi 0, %s34
    %s35 = sphi 0, %s32
    %s36 = sphi 0, %s35
    %s52 = sphi 0, %s36
    %s60 = sphi 0, %s62
    %s63 = sphi 0, %s60
    %s64 = sphi 0, %s63
    %s80 = sphi 0, %s64
    %s88 = sphi 0, %s90
    %s91 = sphi 0, %s88
    %s92 = sphi 0, %s91
    %s108 = sphi 0, %s92
  $region4: #{focal_tversky.1} parent=0 // loop_header_branch
    %11 = sbr.rel (%p9) target = $region8
  $region5: #{focal_tversky.1} parent=0 // loop_body
    %s13 = ssub.s32 %s8, 1
    %s14 = ssub.s32 %s8, 2
    %s21 = sadd.s32 1, %s16
    %p22 = scmp.ge.s32.totalorder %s21, 1
    %s23 = scalar_select %p22, 0, %s21
    %s24 = sadd.s32 1, %s15
    %s25 = scalar_select %p22, %s24, %s15
    %p26 = scmp.ge.s32.totalorder %s25, 2
    %s27 = scalar_select %p26, 0, %s25
    %s28 = ssub.s32 %s15, %s27
    %s29 = ssub.s32 %s16, %s23
    %s30 = sor.u32 %s28, %s29
    %p31 = scmp.eq.s32.totalorder %s30, 0
    %s33 = sadd.s32 %s32, 1
    %s34 = scalar_select %p31, %s32, %s33
    %p37 = pneg %p31
    %p38 = scmp.eq.s32.totalorder %s8, 1
    %p39 = por %p37, %p38
    %p40 = scmp.ne.s32.totalorder %s32, %s35
    %p41 = scmp.eq.s32.totalorder %s8, 0
    %p42 = por %p40, %p41
    %p43 = scmp.ne.s32.totalorder %s32, %s35
    %p44 = scmp.eq.s32.totalorder %s13, 1
    %p45 = por %p43, %p44
    %p46 = scmp.ne.s32.totalorder %s35, %s36
    %p47 = scmp.eq.s32.totalorder %s13, 0
    %p48 = por %p46, %p47
    %p49 = scmp.ne.s32.totalorder %s35, %s36
    %p50 = scmp.eq.s32.totalorder %s14, 1
    %p51 = por %p49, %p50
    %p53 = scmp.ne.s32.totalorder %s36, %s52
    %p54 = scmp.eq.s32.totalorder %s14, 0
    %p55 = por %p53, %p54
    %s56 = ssub.s32 %s15, %s27
    %s57 = ssub.s32 %s16, %s23
    %s58 = sor.u32 %s56, %s57
    %p59 = scmp.eq.s32.totalorder %s58, 0
    %s61 = sadd.s32 %s60, 1
    %s62 = scalar_select %p59, %s60, %s61
    %p65 = pneg %p59
    %p66 = scmp.eq.s32.totalorder %s8, 1
    %p67 = por %p65, %p66
    %p68 = scmp.ne.s32.totalorder %s60, %s63
    %p69 = scmp.eq.s32.totalorder %s8, 0
    %p70 = por %p68, %p69
    %p71 = scmp.ne.s32.totalorder %s60, %s63
    %p72 = scmp.eq.s32.totalorder %s13, 1
    %p73 = por %p71, %p72
    %p74 = scmp.ne.s32.totalorder %s63, %s64
    %p75 = scmp.eq.s32.totalorder %s13, 0
    %p76 = por %p74, %p75
    %p77 = scmp.ne.s32.totalorder %s63, %s64
    %p78 = scmp.eq.s32.totalorder %s14, 1
    %p79 = por %p77, %p78
    %p81 = scmp.ne.s32.totalorder %s64, %s80
    %p82 = scmp.eq.s32.totalorder %s14, 0
    %p83 = por %p81, %p82
    %s84 = ssub.s32 %s15, %s27
    %s85 = ssub.s32 %s16, %s23
    %s86 = sor.u32 %s84, %s85
    %p87 = scmp.eq.s32.totalorder %s86, 0
    %s89 = sadd.s32 %s88, 1
    %s90 = scalar_select %p87, %s88, %s89
    %p93 = pneg %p87
    %p94 = scmp.eq.s32.totalorder %s8, 1
    %p95 = por %p93, %p94
    %p96 = scmp.ne.s32.totalorder %s88, %s91
    %p97 = scmp.eq.s32.totalorder %s8, 0
    %p98 = por %p96, %p97
    %p99 = scmp.ne.s32.totalorder %s88, %s91
    %p100 = scmp.eq.s32.totalorder %s13, 1
    %p101 = por %p99, %p100
    %p102 = scmp.ne.s32.totalorder %s91, %s92
    %p103 = scmp.eq.s32.totalorder %s13, 0
    %p104 = por %p102, %p103
    %p105 = scmp.ne.s32.totalorder %s91, %s92
    %p106 = scmp.eq.s32.totalorder %s14, 1
    %p107 = por %p105, %p106
    %p109 = scmp.ne.s32.totalorder %s92, %s108
    %p110 = scmp.eq.s32.totalorder %s14, 0
    %p111 = por %p109, %p110
    %p112 = scmp.le.s32.totalorder 1, %s8
    %p113 = scmp.lt.s32.totalorder %s8, 3
    %p114 = pnand %p112, %p113
    %p115 = pneg %p114
    // Predicated region
    $region9: #{focal_tversky.1} parent=5 // pred_check
      _
    $region10: #{focal_tversky.1} parent=5 // pred_check_branch
      %117 = sbr.rel (%p114) target = $region12
    $region11: #{focal_tversky.1} parent=5 // pred_region
      %s118 = ssub.s32 %s8, 1
    $region12: #{focal_tversky.1} parent=5 // pred_fallthru
      _
    %p119 = scmp.lt.s32.totalorder %s8, 2
    // Predicated region
    $region13: #{focal_tversky.1} parent=5 // pred_check
      %p120 = pneg %p119
    $region14: #{focal_tversky.1} parent=5 // pred_check_branch
      %122 = sbr.rel (%p120) target = $region16
    $region15: #{focal_tversky.1} parent=5 // pred_region
      // Predicated region
      $region17: #{focal_tversky.1} parent=15 // pred_check
        %p123 = pneg %p42
      $region18: #{focal_tversky.1} parent=15 // pred_check_branch
        %125 = sbr.rel (%p123) target = $region20
      $region19: #{focal_tversky.1} parent=15 // pred_region
        %p126 = scmp.lt.s32.totalorder %s15, 1
        %s127 = scalar_select %p126, %s15, 1
        %p128 = scmp.lt.s32.totalorder %s16, 0
        %s129 = scalar_select %p128, %s16, 0
        %s130 = smul.addr %s127, 4
        %s131 = sadd.s32 %s129, %s130
        %s132 = smul.addr %s131, 2
        %s133 = scalar_lea.vmem %s0, %s132
      $region20: #{focal_tversky.1} parent=15 // pred_fallthru
        _
      // Predicated region
      $region21: #{focal_tversky.1} parent=15 // pred_check
        %p134 = pneg %p70
      $region22: #{focal_tversky.1} parent=15 // pred_check_branch
        %136 = sbr.rel (%p134) target = $region24
      $region23: #{focal_tversky.1} parent=15 // pred_region
        %p137 = scmp.lt.s32.totalorder %s15, 1
        %s138 = scalar_select %p137, %s15, 1
        %p139 = scmp.lt.s32.totalorder %s16, 0
        %s140 = scalar_select %p139, %s16, 0
        %s141 = sadd.s32 %s140, %s138
        %s142 = smul.addr %s141, 2
        %s143 = scalar_lea.vmem %s1, %s142
      $region24: #{focal_tversky.1} parent=15 // pred_fallthru
        _
    $region16: #{focal_tversky.1} parent=5 // pred_fallthru
      _
    %p144 = scmp.le.s32.totalorder 1, %s8
    %p145 = scmp.lt.s32.totalorder %s8, 3
    %p146 = pnand %p144, %p145
    %p147 = pneg %p146
    // Predicated region
    $region25: #{focal_tversky.1} parent=5 // pred_check
      _
    $region26: #{focal_tversky.1} parent=5 // pred_check_branch
      %149 = sbr.rel (%p146) target = $region28
    $region27: #{focal_tversky.1} parent=5 // pred_region
      %s150 = ssub.s32 %s8, 1
      %p151 = scmp.lt.s32.totalorder %s17, 1
      %s152 = scalar_select %p151, %s17, 1
      %p153 = scmp.lt.s32.totalorder %s18, 0
      %s154 = scalar_select %p153, %s18, 0
      %s155 = smul.addr %s152, 4
      %s156 = sadd.s32 %s154, %s155
      %s157 = smul.addr %s156, 2
      %s158 = scalar_lea.vmem %s0, %s157
      %p159 = pneg %p48
      %p160 = pneg %p45
      %p161 = scmp.lt.s32.totalorder %s17, 1
      %s162 = scalar_select %p161, %s17, 1
      %p163 = scmp.lt.s32.totalorder %s18, 0
      %s164 = scalar_select %p163, %s18, 0
      %s165 = sadd.s32 %s164, %s162
      %s166 = smul.addr %s165, 2
      %s167 = scalar_lea.vmem %s1, %s166
      %p168 = pneg %p76
      %p169 = pneg %p73
      %p170 = pneg %p104
      %p171 = pneg %p101
      %p172 = scmp.lt.s32.totalorder %s17, 1
      %s173 = scalar_select %p172, %s17, 1
      %p174 = scmp.lt.s32.totalorder %s18, 0
      %s175 = scalar_select %p174, %s18, 0
      %s176 = smul.addr %s175, 2
      %s177 = smul.addr %s173, 2
      %s178 = sadd.s32 %s176, %s177
      %s179 = smul.addr %s178, 8
      %s180 = scalar_lea.vmem %s2, %s179
      %p181 = scmp.lt.s32.totalorder %s17, 1
      %s182 = scalar_select %p181, %s17, 1
      %p183 = scmp.lt.s32.totalorder %s18, 0
      %s184 = scalar_select %p183, %s18, 0
      %s185 = smul.addr %s182, 4
      %s186 = sadd.s32 %s184, %s185
      %s187 = smul.addr %s186, 2
      %s188 = scalar_lea.vmem %s0, %s187
      %p189 = scmp.lt.s32.totalorder %s17, 1
      %s190 = scalar_select %p189, %s17, 1
      %p191 = scmp.lt.s32.totalorder %s18, 0
      %s192 = scalar_select %p191, %s18, 0
      %s193 = sadd.s32 %s192, %s190
      %s194 = smul.addr %s193, 2
      %s195 = scalar_lea.vmem %s1, %s194
      %p196 = scmp.lt.s32.totalorder %s17, 1
      %s197 = scalar_select %p196, %s17, 1
      %p198 = scmp.lt.s32.totalorder %s18, 0
      %s199 = scalar_select %p198, %s18, 0
      %s200 = smul.addr %s199, 2
      %s201 = smul.addr %s197, 2
      %s202 = sadd.s32 %s200, %s201
      %s203 = smul.addr %s202, 8
      %s204 = scalar_lea.vmem %s2, %s203
      %v205 = vld [vmem:[%s188] sm:$0x3]
      %v206 = vld [vmem:[%s188 + $0x2] sm:$0x3]
      %v207 = vld [vmem:[%s188 + $0x4] sm:$0x3]
      %v208 = vld [vmem:[%s188 + $0x6] sm:$0x3]
      %v209 = vld [vmem:[%s195] sm:$0x3]
      %vm210 = vcmp.ne.s32.totalorder %v209, 4294967196
      %vm211 = vcmask 1041408
      %v212 = vsel %vm211, %v205, -inf
      %v213 = vsel %vm211, %v206, -inf
      %v214 = vsel %vm211, %v207, -inf
      %v215 = vsel %vm211, %v208, -inf
      %v216 = vmax.f32 %v212, %v213
      %v217 = vmax.f32 %v214, %v215
      %v218 = vmax.f32 %v216, %v217
      %v219 = vsub.f32 %v205, %v218
      %v220 = vsub.f32 %v206, %v218
      %v221 = vsub.f32 %v207, %v218
      %v222 = vsub.f32 %v208, %v218
      %v223 = vmul.f32 %v219, 1.442695
      %v224 = vpow.pop %v223
      %v225 = vmul.f32 %v220, 1.442695
      %v226 = vpow.pop %v225
      %v227 = vmul.f32 %v221, 1.442695
      %v228 = vpow.pop %v227
      %v229 = vmul.f32 %v222, 1.442695
      %v230 = vpow.pop %v229
      %v231 = vsel %vm211, %v224, 0.0
      %v232 = vsel %vm211, %v226, 0.0
      %v233 = vadd.f32 %v231, %v232
      %v234 = vsel %vm211, %v228, 0.0
      %v235 = vadd.f32 %v233, %v234
      %v236 = vsel %vm211, %v230, 0.0
      %v237 = vadd.f32 %v235, %v236
      %v238 = vrcp.pop %v237
      %v239 = vsel %vm210, 1, 0
      %v240 = vcvt.s32.f32 %v239
      %v241 = vmul.f32 %v238, %v240
      %v242 = vmul.f32 %v224, %v241
      %v243 = vmul.f32 %v226, %v241
      %v244 = vmul.f32 %v228, %v241
      %v245 = vmul.f32 %v230, %v241
      %vm246 = vcmp.eq.s32.totalorder %v209, 0
      %v247 = vsel %vm246, %v242, 0.0
      %v248 = vsel %vm211, %v247, 0.0
      %v249 = vrot.slane %v248, 4
      %v250 = vadd.f32 %v248, %v249
      %v251 = vrot.slane %v250, 2
      %v252 = vadd.f32 %v250, %v251
      %v253 = vrot.slane %v252, 1
      %v254 = vadd.f32 %v252, %v253
      %v255 = vsel %vm211, %v242, 0.0
      %v256 = vrot.slane %v255, 4
      %v257 = vadd.f32 %v255, %v256
      %v258 = vrot.slane %v257, 2
      %v259 = vadd.f32 %v257, %v258
      %v260 = vrot.slane %v259, 1
      %v261 = vadd.f32 %v259, %v260
      %v262 = vsel %vm246, 1.0, 0.0
      %v263 = vsel %vm211, %v262, 0.0
      %v264 = vrot.slane %v263, 4
      %v265 = vadd.f32 %v263, %v264
      %v266 = vrot.slane %v265, 2
      %v267 = vadd.f32 %v265, %v266
      %v268 = vrot.slane %v267, 1
      %v269 = vadd.f32 %v267, %v268
      %vm270 = vcmp.eq.s32.totalorder %v209, 1
      %v271 = vsel %vm270, %v243, 0.0
      %v272 = vsel %vm211, %v271, 0.0
      %v273 = vrot.slane %v272, 4
      %v274 = vadd.f32 %v272, %v273
      %v275 = vrot.slane %v274, 2
      %v276 = vadd.f32 %v274, %v275
      %v277 = vrot.slane %v276, 1
      %v278 = vadd.f32 %v276, %v277
      %v279 = vsel %vm211, %v243, 0.0
      %v280 = vrot.slane %v279, 4
      %v281 = vadd.f32 %v279, %v280
      %v282 = vrot.slane %v281, 2
      %v283 = vadd.f32 %v281, %v282
      %v284 = vrot.slane %v283, 1
      %v285 = vadd.f32 %v283, %v284
      %v286 = vsel %vm270, 1.0, 0.0
      %v287 = vsel %vm211, %v286, 0.0
      %v288 = vrot.slane %v287, 4
      %v289 = vadd.f32 %v287, %v288
      %v290 = vrot.slane %v289, 2
      %v291 = vadd.f32 %v289, %v290
      %v292 = vrot.slane %v291, 1
      %v293 = vadd.f32 %v291, %v292
      %vm294 = vcmp.eq.s32.totalorder %v209, 2
      %v295 = vsel %vm294, %v244, 0.0
      %v296 = vsel %vm211, %v295, 0.0
      %v297 = vrot.slane %v296, 4
      %v298 = vadd.f32 %v296, %v297
      %v299 = vrot.slane %v298, 2
      %v300 = vadd.f32 %v298, %v299
      %v301 = vrot.slane %v300, 1
      %v302 = vadd.f32 %v300, %v301
      %v303 = vsel %vm211, %v244, 0.0
      %v304 = vrot.slane %v303, 4
      %v305 = vadd.f32 %v303, %v304
      %v306 = vrot.slane %v305, 2
      %v307 = vadd.f32 %v305, %v306
      %v308 = vrot.slane %v307, 1
      %v309 = vadd.f32 %v307, %v308
      %v310 = vsel %vm294, 1.0, 0.0
      %v311 = vsel %vm211, %v310, 0.0
      %v312 = vrot.slane %v311, 4
      %v313 = vadd.f32 %v311, %v312
      %v314 = vrot.slane %v313, 2
      %v315 = vadd.f32 %v313, %v314
      %v316 = vrot.slane %v315, 1
      %v317 = vadd.f32 %v315, %v316
      %vm318 = vcmp.eq.s32.totalorder %v209, 3
      %v319 = vsel %vm318, %v245, 0.0
      %v320 = vsel %vm211, %v319, 0.0
      %v321 = vrot.slane %v320, 4
      %v322 = vadd.f32 %v320, %v321
      %v323 = vrot.slane %v322, 2
      %v324 = vadd.f32 %v322, %v323
      %v325 = vrot.slane %v324, 1
      %v326 = vadd.f32 %v324, %v325
      %v327 = vsel %vm211, %v245, 0.0
      %v328 = vrot.slane %v327, 4
      %v329 = vadd.f32 %v327, %v328
      %v330 = vrot.slane %v329, 2
      %v331 = vadd.f32 %v329, %v330
      %v332 = vrot.slane %v331, 1
      %v333 = vadd.f32 %v331, %v332
      %v334 = vsel %vm318, 1.0, 0.0
      %v335 = vsel %vm211, %v334, 0.0
      %v336 = vrot.slane %v335, 4
      %v337 = vadd.f32 %v335, %v336
      %v338 = vrot.slane %v337, 2
      %v339 = vadd.f32 %v337, %v338
      %v340 = vrot.slane %v339, 1
      %v341 = vadd.f32 %v339, %v340
      %vm342 = vcmask 1040384
      %v343 = vsel %vm342, %v254, %v278
      %v344 = vsel %vm211, %v343, %v302
      %vm345 = vcmask 1042432
      %v346 = vsel %vm345, %v344, %v326
      %vm347 = vcmask 1043456
      %v348 = vsel %vm347, %v346, %v261
      %vm349 = vcmask 1044480
      %v350 = vsel %vm349, %v348, %v285
      %vm351 = vcmask 1045504
      %v352 = vsel %vm351, %v350, %v309
      %vm353 = vcmask 1046528
      %v354 = vsel %vm353, %v352, %v333
      %v355 = vsel %vm342, %v269, %v293
      %v356 = vsel %vm211, %v355, %v317
      %v357 = vsel %vm345, %v356, %v341
      %358 = vst [vmem:[%s204] sm:$0xff] %v354
      %359 = vst [vmem:[%s204 + $0x8] sm:$0xf] %v357
      %p360 = scmp.lt.s32.totalorder %s17, 1
      %s361 = scalar_select %p360, %s17, 1
      %p362 = scmp.lt.s32.totalorder %s18, 0
      %s363 = scalar_select %p362, %s18, 0
      %s364 = smul.addr %s363, 2
      %s365 = smul.addr %s361, 2
      %s366 = sadd.s32 %s364, %s365
      %s367 = smul.addr %s366, 8
      %s368 = scalar_lea.vmem %s2, %s367
      // Predicated region
      $region29: #{focal_tversky.1} parent=27 // pred_check
        %p369 = pneg %p101
      $region30: #{focal_tversky.1} parent=27 // pred_check_branch
        %371 = sbr.rel (%p369) target = $region32
      $region31: #{focal_tversky.1} parent=27 // pred_region
        _
      $region32: #{focal_tversky.1} parent=27 // pred_fallthru
        _
    $region28: #{focal_tversky.1} parent=5 // pred_fallthru
      _
    %p372 = scmp.le.s32.totalorder 2, %s8
    // Predicated region
    $region33: #{focal_tversky.1} parent=5 // pred_check
      %p373 = pneg %p372
    $region34: #{focal_tversky.1} parent=5 // pred_check_branch
      %375 = sbr.rel (%p373) target = $region36
    $region35: #{focal_tversky.1} parent=5 // pred_region
      %s376 = ssub.s32 %s8, 2
      // Predicated region
      $region37: #{focal_tversky.1} parent=35 // pred_check
        %p377 = pneg %p107
      $region38: #{focal_tversky.1} parent=35 // pred_check_branch
        %379 = sbr.rel (%p377) target = $region40
      $region39: #{focal_tversky.1} parent=35 // pred_region
        %p380 = scmp.lt.s32.totalorder %s19, 1
        %s381 = scalar_select %p380, %s19, 1
        %p382 = scmp.lt.s32.totalorder %s20, 0
        %s383 = scalar_select %p382, %s20, 0
        %s384 = smul.addr %s383, 2
        %s385 = smul.addr %s381, 2
        %s386 = sadd.s32 %s384, %s385
        %s387 = smul.addr %s386, 8
        %s388 = scalar_lea.vmem %s2, %s387
      $region40: #{focal_tversky.1} parent=35 // pred_fallthru
        _
    $region36: #{focal_tversky.1} parent=5 // pred_fallthru
      _
  $region6: #{focal_tversky.1} parent=0 // loop_footer
    %s12 = sadd.s32 1, %s8
  $region7: #{focal_tversky.1} parent=0 // loop_footer_branch
    %7 = sbr.rel target = $region3
  $region8: #{focal_tversky.1} parent=0 // loop_exit
    _

</llo_original>
